<compile_context>
chip_gen: v7x
topology: tpu7x:2x2x1
jax: 0.10.0
libtpu: 0.0.40
codegen_flags: <defaults>
</compile_context>

<pallas_src>
import math
from functools import partial

import jax
import jax.numpy as jnp
from jax.experimental import pallas as pl
from jax.experimental.pallas import tpu as pltpu

LN_EPS = 1e-12                      # BERT layer_norm_eps


# --------------------------- hardware-aware config --------------------------

_HW_CFG = None


def _hw_config():
    """Generation-dependent VMEM budget / tile targets / bf16-exp flag."""
    global _HW_CFG
    if _HW_CFG is not None:
        return _HW_CFG
    vmem_cap = 64 * 1024 * 1024
    try:
        vmem_cap = int(pltpu.get_tpu_info().vmem_capacity_bytes)
    except Exception:
        pass
    bf16_exp = False
    try:
        kind = jax.devices()[0].device_kind.lower()
        # bf16 EUP exists on v6e / v7x; keep f32 exp on v5e and earlier.
        bf16_exp = ("v6" in kind) or ("v7" in kind) or ("tpu7" in kind)
    except Exception:
        bf16_exp = False
    if vmem_cap >= 128 * 1024 * 1024:        # v5e / v6e
        cfg = dict(vmem_limit=100 * 1024 * 1024, tq_target=512,
                   tm_post=512, tm_qkv=512, ts_embed=1024)
    else:                                     # v7x (64 MiB) and smaller
        cfg = dict(vmem_limit=48 * 1024 * 1024, tq_target=128,
                   tm_post=256, tm_qkv=256, ts_embed=512)
    cfg["bf16_exp"] = bf16_exp
    _HW_CFG = cfg
    return cfg


def _pick_tile(n, target):
    """Largest t <= target dividing n, multiple of 8 (or t == n).

    Falls back to the full dimension (always a legal block) when no aligned
    divisor exists; for awkward sizes that may exceed the VMEM budget, so
    prefer shapes with a multiple-of-8 divisor below the target.
    """
    t = min(n, target)
    while t > 1:
        if n % t == 0 and (t % 8 == 0 or t == n):
            return t
        t -= 1
    return n


def _layernorm_f32(x, gamma, beta):
    mu = jnp.mean(x, axis=-1, keepdims=True)
    var = jnp.mean(jnp.square(x - mu), axis=-1, keepdims=True)
    return (x - mu) * jax.lax.rsqrt(var + LN_EPS) * gamma + beta


def _gelu_f32(x):
    # TODO(synk): PyTorch nn.GELU() default is the exact erf form; tanh
    # approximation used since erf has no guaranteed Mosaic lowering.
    c = math.sqrt(2.0 / math.pi)
    return 0.5 * x * (1.0 + jnp.tanh(c * (x + 0.044715 * x * x * x)))


def _inv_spec(shape):
    """Grid-invariant operand: whole-array block, single-buffered in VMEM."""
    nd = len(shape)
    return pl.BlockSpec(shape, lambda *_: (0,) * nd,
                        pipeline_mode=pl.Buffered(1))


# ----------------------------- Pallas kernels -------------------------------

def embed_ln_kernel(we_ref, pe_ref, tt_ref, ttab_ref, g_ref, b_ref, out_ref):
    # word emb (gathered) + position emb (direct table block) +
    # token-type emb (one-hot @ tiny table), then LayerNorm (BertEmbeddings).
    te = jnp.dot(tt_ref[0], ttab_ref[...], preferred_element_type=jnp.float32)
    x = (we_ref[0].astype(jnp.float32)
         + pe_ref[0].astype(jnp.float32)
         + te)
    out_ref[0] = _layernorm_f32(x, g_ref[...], b_ref[...]).astype(out_ref.dtype)


def qkv_proj_kernel(x_ref, w_ref, b_ref, q_ref, k_ref, v_ref):
    # fused QKV projection: one wide (tm, H) @ (H, 3H) matmul, then static
    # lane slices -> three token-major lane-dense outputs (no transposes).
    H = q_ref.shape[-1]
    acc = jnp.dot(x_ref[0], w_ref[...],
                  preferred_element_type=jnp.float32) + b_ref[...]
    q_ref[0] = acc[:, :H].astype(q_ref.dtype)
    k_ref[0] = acc[:, H:2 * H].astype(k_ref.dtype)
    v_ref[0] = acc[:, 2 * H:].astype(v_ref.dtype)


def attention_kernel(q_ref, k_ref, v_ref, out_ref, *,
                     num_heads, head_dim, use_bf16_exp):
    # Full (bidirectional) attention in token-major layout.  Heads are split
    # with static lane slices and processed in an unrolled loop (same per-head
    # MXU matmuls as a head-batched dot_general); context is re-merged with an
    # in-VMEM lane concatenate so the output store is a full-width (tq, H).
    q = q_ref[0]          # (tq, H), 1/sqrt(head_dim) folded into Wq
    k = k_ref[0]          # (S, H)
    v = v_ref[0]          # (S, H)
    ctx_heads = []
    for h in range(num_heads):
        lo = h * head_dim
        hi = lo + head_dim
        qh = q[:, lo:hi]
        kh = k[:, lo:hi]
        vh = v[:, lo:hi]
        # scores: (tq, S), contraction over head_dim ("NT" matmul, no .T)
        s = jax.lax.dot_general(qh, kh, (((1,), (1,)), ((), ())),
                                preferred_element_type=jnp.float32)
        m = jnp.max(s, axis=-1, keepdims=True)
        z = s - m                                   # <= 0, safe for bf16 exp
        if use_bf16_exp:
            p = jnp.exp(z.astype(jnp.bfloat16))     # bf16 EUP (v6e / v7x)
            denom = jnp.sum(p.astype(jnp.float32), axis=-1, keepdims=True)
            pv = p
        else:
            p = jnp.exp(z)                          # f32 exp (v5e and older)
            denom = jnp.sum(p, axis=-1, keepdims=True)
            pv = p.astype(vh.dtype)
        ctx = jnp.dot(pv, vh, preferred_element_type=jnp.float32)  # (tq, hd)
        ctx = ctx * pl.reciprocal(denom, approx=True)
        ctx_heads.append(ctx.astype(out_ref.dtype))
    out_ref[0] = jnp.concatenate(ctx_heads, axis=-1)   # lane-dense (tq, H)


def post_attn_mlp_kernel(x_ref, ctx_ref, wo_ref, bo_ref, ln1w_ref, ln1b_ref,
                         w1_ref, b1_ref, w2_ref, b2_ref, ln2w_ref, ln2b_ref,
                         out_ref):
    # o_proj + residual + LN1 + MLP(fc1 -> GELU -> fc2) + residual + LN2
    x = x_ref[...].astype(jnp.float32)
    attn = jnp.dot(ctx_ref[...], wo_ref[...],
                   preferred_element_type=jnp.float32) + bo_ref[...]
    h1 = _layernorm_f32(x + attn, ln1w_ref[...], ln1b_ref[...])
    # GELU math in f32, materialized bf16 to halve live scratch.
    mid = _gelu_f32(jnp.dot(h1.astype(w1_ref.dtype), w1_ref[...],
                            preferred_element_type=jnp.float32) + b1_ref[...]
                    ).astype(jnp.bfloat16)
    mlp = jnp.dot(mid, w2_ref[...],
                  preferred_element_type=jnp.float32) + b2_ref[...]
    out_ref[...] = _layernorm_f32(h1 + mlp, ln2w_ref[...],
                                  ln2b_ref[...]).astype(out_ref.dtype)


def pooler_classifier_kernel(x_ref, wp_ref, bp_ref, wc_ref, bc_ref, out_ref):
    # BertPooler (dense + tanh on first token) + classifier head.
    # TODO(synk): could be folded into the last post-attention call to save a
    # launch and an HBM round-trip of the hidden state (minor).
    pooled = jnp.tanh(jnp.dot(x_ref[...], wp_ref[...],
                              preferred_element_type=jnp.float32) + bp_ref[...])
    out_ref[...] = jnp.dot(pooled.astype(wc_ref.dtype), wc_ref[...],
                           preferred_element_type=jnp.float32) + bc_ref[...]


# -------------------------------- wrappers ----------------------------------

def bert_embeddings(params, input_ids, token_type_ids, position_ids=None):
    cfg = _hw_config()
    B, S = input_ids.shape
    H = params["word_emb"].shape[1]
    TV = params["type_emb"].shape[0]

    # word-embedding gather stays in plain JAX (true vocab gather)
    we = jnp.take(params["word_emb"], input_ids.reshape(-1),
                  axis=0).reshape(B, S, H)
    if position_ids is None:
        # standard arange positions: read the table directly, no gather
        pe = params["pos_emb"][:S].reshape(1, S, H)
        pe_map = lambda b, i: (0, i, 0)
    else:
        pe = jnp.take(params["pos_emb"], position_ids.reshape(-1),
                      axis=0).reshape(B, S, H)
        pe_map = lambda b, i: (b, i, 0)
    # token types resolved in-kernel via a tiny one-hot matmul (TV rows)
    tt_oh = jax.nn.one_hot(token_type_ids, TV, dtype=jnp.bfloat16)   # (B,S,TV)

    ts = _pick_tile(S, cfg["ts_embed"])
    tok = lambda b, i: (b, i, 0)
    return pl.pallas_call(
        embed_ln_kernel,
        out_shape=jax.ShapeDtypeStruct((B, S, H), jnp.bfloat16),
        grid=(B, S // ts),
        in_specs=[pl.BlockSpec((1, ts, H), tok),
                  pl.BlockSpec((1, ts, H), pe_map),
                  pl.BlockSpec((1, ts, TV), tok),
                  _inv_spec((TV, H)),
                  _inv_spec((1, H)), _inv_spec((1, H))],
        out_specs=pl.BlockSpec((1, ts, H), tok),
        compiler_params=pltpu.CompilerParams(
            dimension_semantics=("parallel", "parallel"),
            vmem_limit_bytes=cfg["vmem_limit"]),
    )(we, pe, tt_oh, params["type_emb"], params["emb_ln_w"], params["emb_ln_b"])


def bert_qkv_proj(lp, hidden):
    cfg = _hw_config()
    B, S, H = hidden.shape
    H3 = lp["wqkv_t"].shape[1]
    tm = _pick_tile(S, cfg["tm_qkv"])
    tok = lambda b, i: (b, i, 0)
    out_sh = jax.ShapeDtypeStruct((B, S, H), jnp.bfloat16)
    return pl.pallas_call(
        qkv_proj_kernel,
        out_shape=(out_sh, out_sh, out_sh),
        grid=(B, S // tm),
        in_specs=[pl.BlockSpec((1, tm, H), tok),
                  _inv_spec((H, H3)), _inv_spec((1, H3))],
        out_specs=(pl.BlockSpec((1, tm, H), tok),
                   pl.BlockSpec((1, tm, H), tok),
                   pl.BlockSpec((1, tm, H), tok)),
        compiler_params=pltpu.CompilerParams(
            dimension_semantics=("parallel", "parallel"),
            vmem_limit_bytes=cfg["vmem_limit"]),
    )(hidden, lp["wqkv_t"], lp["bqkv"])


def bert_attention(q, k, v, num_heads, head_dim):
    cfg = _hw_config()
    B, S, H = q.shape
    tq = _pick_tile(S, cfg["tq_target"])
    q_spec = pl.BlockSpec((1, tq, H), lambda b, i: (b, i, 0))
    kv_spec = pl.BlockSpec((1, S, H), lambda b, i: (b, 0, 0))
    kern = partial(attention_kernel, num_heads=num_heads, head_dim=head_dim,
                   use_bf16_exp=cfg["bf16_exp"])
    return pl.pallas_call(
        kern,
        out_shape=jax.ShapeDtypeStruct((B, S, H), jnp.bfloat16),
        grid=(B, S // tq),
        in_specs=[q_spec, kv_spec, kv_spec],
        out_specs=pl.BlockSpec((1, tq, H), lambda b, i: (b, i, 0)),
        compiler_params=pltpu.CompilerParams(
            dimension_semantics=("parallel", "parallel"),
            vmem_limit_bytes=cfg["vmem_limit"]),
    )(q, k, v)


def bert_post_attention(lp, hidden2d, ctx2d):
    cfg = _hw_config()
    BS, H = hidden2d.shape
    I = lp["w1_t"].shape[1]
    tm = _pick_tile(BS, cfg["tm_post"])
    row = lambda i: (i, 0)
    return pl.pallas_call(
        post_attn_mlp_kernel,
        out_shape=jax.ShapeDtypeStruct((BS, H), jnp.bfloat16),
        grid=(BS // tm,),
        in_specs=[pl.BlockSpec((tm, H), row),            # residual hidden
                  pl.BlockSpec((tm, H), row),            # attention context
                  _inv_spec((H, H)), _inv_spec((1, H)),  # o_proj
                  _inv_spec((1, H)), _inv_spec((1, H)),  # input_layernorm
                  _inv_spec((H, I)), _inv_spec((1, I)),  # fc1
                  _inv_spec((I, H)), _inv_spec((1, H)),  # fc2
                  _inv_spec((1, H)), _inv_spec((1, H))], # post_layernorm
        out_specs=pl.BlockSpec((tm, H), row),
        compiler_params=pltpu.CompilerParams(
            dimension_semantics=("parallel",),
            vmem_limit_bytes=cfg["vmem_limit"]),
    )(hidden2d, ctx2d, lp["wo_t"], lp["bo"], lp["ln1_w"], lp["ln1_b"],
      lp["w1_t"], lp["b1"], lp["w2_t"], lp["b2"], lp["ln2_w"], lp["ln2_b"])


def bert_encoder_layer(lp, hidden, num_heads, head_dim):
    B, S, H = hidden.shape
    q, k, v = bert_qkv_proj(lp, hidden)                    # 3x (B, S, H) bf16
    ctx = bert_attention(q, k, v, num_heads, head_dim)     # (B, S, H) bf16
    BS = B * S
    out2d = bert_post_attention(lp, hidden.reshape(BS, H), ctx.reshape(BS, H))
    return out2d.reshape(B, S, H)


def bert_pooler_classifier(params, hidden):
    cfg = _hw_config()
    # TODO(synk): AttentionMetadata packed-sequence pooling (cumsum of
    # seq_lens) reduces to taking the first token per sequence in dense [B,S].
    first_tok = hidden[:, 0, :]
    num_labels = params["cls_w_t"].shape[1]
    B = first_tok.shape[0]
    return pl.pallas_call(
        pooler_classifier_kernel,
        out_shape=jax.ShapeDtypeStruct((B, num_labels), jnp.float32),
        compiler_params=pltpu.CompilerParams(vmem_limit_bytes=cfg["vmem_limit"]),
    )(first_tok, params["pool_w_t"], params["pool_b"],
      params["cls_w_t"], params["cls_b"])


def bert_for_sequence_classification(params, input_ids, token_type_ids=None,
                                     position_ids=None):
    # TODO(synk): no attention_mask / padded-sequence handling; dense full
    # attention matches PredefinedAttentionMask.FULL for unpadded batches.
    if token_type_ids is None:
        token_type_ids = jnp.zeros_like(input_ids)
    hidden = bert_embeddings(params, input_ids, token_type_ids, position_ids)
    for lp in params["layers"]:
        hidden = bert_encoder_layer(lp, hidden,
                                    params["num_heads"], params["head_dim"])
    logits = bert_pooler_classifier(params, hidden)
    return logits.astype(jnp.float32)   # logits.float()


# ------------------------------ param init ----------------------------------

def init_bert_params(key, cfg):
    H, I = cfg["hidden_size"], cfg["intermediate_size"]
    nh = cfg["num_attention_heads"]
    hd = H // nh
    state = {"key": key}

    def w(shape, scale=0.02):
        state["key"], sub = jax.random.split(state["key"])
        return scale * jax.random.normal(sub, shape, dtype=jnp.float32)

    bf = lambda x: x.astype(jnp.bfloat16)
    params = {
        "num_heads": nh,
        "head_dim": hd,
        "word_emb": bf(w((cfg["vocab_size"], H))),
        "pos_emb": bf(w((cfg["max_position_embeddings"], H))),
        "type_emb": bf(w((cfg["type_vocab_size"], H))),
        "emb_ln_w": jnp.ones((1, H), jnp.float32),
        "emb_ln_b": jnp.zeros((1, H), jnp.float32),
        "layers": [],
    }
    qk_scale = 1.0 / math.sqrt(hd)
    for _ in range(cfg["num_hidden_layers"]):
        wq, wk, wv = w((H, H)), w((H, H)), w((H, H))      # PyTorch [out, in]
        bq, bk, bv = w((1, H)), w((1, H)), w((1, H))
        layer = {
            # 1/sqrt(head_dim) folded into the Q projection weights/bias
            "wqkv_t": bf(jnp.concatenate([wq.T * qk_scale, wk.T, wv.T], axis=1)),
            "bqkv": jnp.concatenate([bq * qk_scale, bk, bv], axis=1),
            "wo_t": bf(w((H, H)).T),
            "bo": w((1, H)),
            "ln1_w": jnp.ones((1, H), jnp.float32),
            "ln1_b": jnp.zeros((1, H), jnp.float32),
            "w1_t": bf(w((I, H)).T),
            "b1": w((1, I)),
            "w2_t": bf(w((H, I)).T),
            "b2": w((1, H)),
            "ln2_w": jnp.ones((1, H), jnp.float32),
            "ln2_b": jnp.zeros((1, H), jnp.float32),
        }
        params["layers"].append(layer)
    params["pool_w_t"] = bf(w((H, H)).T)
    params["pool_b"] = w((1, H))
    params["cls_w_t"] = bf(w((cfg["num_labels"], H)).T)
    params["cls_b"] = w((1, cfg["num_labels"]))
    return params


if __name__ == "__main__":
    cfg = dict(vocab_size=128, hidden_size=32, num_hidden_layers=2,
               num_attention_heads=2, intermediate_size=64,
               max_position_embeddings=64, type_vocab_size=2, num_labels=3)
    B, S = 2, 8

    key = jax.random.PRNGKey(0)
    pkey, ikey = jax.random.split(key)
    params = init_bert_params(pkey, cfg)

    input_ids = jax.random.randint(ikey, (B, S), 0, cfg["vocab_size"],
                                   dtype=jnp.int32)
    token_type_ids = jnp.zeros((B, S), dtype=jnp.int32)

    # position_ids=None -> standard arange positions (matches the reference
    # default); explicit position_ids are supported via a gather fallback.
    logits = bert_for_sequence_classification(params, input_ids,
                                              token_type_ids, position_ids=None)
    jax.block_until_ready(logits)
    assert logits.shape == (B, cfg["num_labels"])
    assert logits.dtype == jnp.float32
    print("KERNEL_OK")
</pallas_src>

<mosaic_0001>
module attributes {stable_mosaic.version = 11 : i64} {
  func.func @embed_ln_kernel(%arg0: i32, %arg1: i32, %arg2: memref<1x8x32xbf16, #tpu.memory_space<vmem>>, %arg3: memref<1x8x32xbf16, #tpu.memory_space<vmem>>, %arg4: memref<1x8x2xbf16, #tpu.memory_space<vmem>>, %arg5: memref<2x32xbf16, #tpu.memory_space<vmem>>, %arg6: memref<1x32xf32, #tpu.memory_space<vmem>>, %arg7: memref<1x32xf32, #tpu.memory_space<vmem>>, %arg8: memref<1x8x32xbf16, #tpu.memory_space<vmem>>) attributes {dimension_semantics = [#tpu.dimension_semantics<parallel>, #tpu.dimension_semantics<parallel>], iteration_bounds = array<i64: 2, 1>, scalar_prefetch = 0 : i64, scratch_operands = 0 : i64, tpu.core_type = #tpu.core_type<tc>, window_params = [{transform_indices = @transform_0, window_bounds = array<i64: 1, 8, 32>}, {transform_indices = @transform_1, window_bounds = array<i64: 1, 8, 32>}, {transform_indices = @transform_2, window_bounds = array<i64: 1, 8, 2>}, {pipeline_mode = #tpu.pipeline_mode<synchronous>, transform_indices = @transform_3, window_bounds = array<i64: 2, 32>}, {pipeline_mode = #tpu.pipeline_mode<synchronous>, transform_indices = @transform_4, window_bounds = array<i64: 1, 32>}, {pipeline_mode = #tpu.pipeline_mode<synchronous>, transform_indices = @transform_5, window_bounds = array<i64: 1, 32>}, {transform_indices = @transform_6, window_bounds = array<i64: 1, 8, 32>}]} {
    %c0 = arith.constant 0 : index
    %c0_0 = arith.constant 0 : index
    %c0_1 = arith.constant 0 : index
    %0 = vector.load %arg4[%c0, %c0_0, %c0_1] : memref<1x8x2xbf16, #tpu.memory_space<vmem>>, vector<1x8x2xbf16>
    %1 = vector.shape_cast %0 : vector<1x8x2xbf16> to vector<8x2xbf16>
    %c0_2 = arith.constant 0 : index
    %c0_3 = arith.constant 0 : index
    %2 = vector.load %arg5[%c0_2, %c0_3] : memref<2x32xbf16, #tpu.memory_space<vmem>>, vector<2x32xbf16>
    %cst = arith.constant dense<0.000000e+00> : vector<8x32xf32>
    %3 = tpu.matmul %1, %2, %cst {dimension_numbers = #tpu.dot_dimension_numbers<[1], [0], [0], [1], [0, 0, 1, 1], [], []>} : vector<8x2xbf16>, vector<2x32xbf16>, vector<8x32xf32> -> vector<8x32xf32>
    %c0_4 = arith.constant 0 : index
    %c0_5 = arith.constant 0 : index
    %c0_6 = arith.constant 0 : index
    %4 = vector.load %arg2[%c0_4, %c0_5, %c0_6] : memref<1x8x32xbf16, #tpu.memory_space<vmem>>, vector<1x8x32xbf16>
    %5 = vector.shape_cast %4 : vector<1x8x32xbf16> to vector<8x32xbf16>
    %6 = arith.extf %5 : vector<8x32xbf16> to vector<8x32xf32>
    %c0_7 = arith.constant 0 : index
    %c0_8 = arith.constant 0 : index
    %c0_9 = arith.constant 0 : index
    %7 = vector.load %arg3[%c0_7, %c0_8, %c0_9] : memref<1x8x32xbf16, #tpu.memory_space<vmem>>, vector<1x8x32xbf16>
    %8 = vector.shape_cast %7 : vector<1x8x32xbf16> to vector<8x32xbf16>
    %9 = arith.extf %8 : vector<8x32xbf16> to vector<8x32xf32>
    %10 = arith.addf %6, %9 : vector<8x32xf32>
    %11 = arith.addf %10, %3 : vector<8x32xf32>
    %c0_10 = arith.constant 0 : index
    %c0_11 = arith.constant 0 : index
    %12 = vector.load %arg6[%c0_10, %c0_11] : memref<1x32xf32, #tpu.memory_space<vmem>>, vector<1x32xf32>
    %c0_12 = arith.constant 0 : index
    %c0_13 = arith.constant 0 : index
    %13 = vector.load %arg7[%c0_12, %c0_13] : memref<1x32xf32, #tpu.memory_space<vmem>>, vector<1x32xf32>
    %cst_14 = arith.constant dense<0.000000e+00> : vector<8xf32>
    %14 = vector.multi_reduction <add>, %11, %cst_14 [1] : vector<8x32xf32> to vector<8xf32>
    %15 = vector.shape_cast %14 : vector<8xf32> to vector<8x1xf32>
    %cst_15 = arith.constant 3.200000e+01 : f32
    %16 = vector.broadcast %cst_15 : f32 to vector<8x1xf32>
    %17 = arith.divf %15, %16 : vector<8x1xf32>
    %18 = vector.broadcast %17 : vector<8x1xf32> to vector<8x32xf32>
    %19 = arith.subf %11, %18 : vector<8x32xf32>
    %20 = arith.mulf %19, %19 : vector<8x32xf32>
    %cst_16 = arith.constant dense<0.000000e+00> : vector<8xf32>
    %21 = vector.multi_reduction <add>, %20, %cst_16 [1] : vector<8x32xf32> to vector<8xf32>
    %22 = vector.shape_cast %21 : vector<8xf32> to vector<8x1xf32>
    %cst_17 = arith.constant 3.200000e+01 : f32
    %23 = vector.broadcast %cst_17 : f32 to vector<8x1xf32>
    %24 = arith.divf %22, %23 : vector<8x1xf32>
    %25 = vector.broadcast %17 : vector<8x1xf32> to vector<8x32xf32>
    %26 = arith.subf %11, %25 : vector<8x32xf32>
    %cst_18 = arith.constant 9.99999996E-13 : f32
    %27 = vector.broadcast %cst_18 : f32 to vector<8x1xf32>
    %28 = arith.addf %24, %27 : vector<8x1xf32>
    %29 = math.rsqrt %28 : vector<8x1xf32>
    %30 = vector.broadcast %29 : vector<8x1xf32> to vector<8x32xf32>
    %31 = arith.mulf %26, %30 : vector<8x32xf32>
    %32 = vector.broadcast %12 : vector<1x32xf32> to vector<8x32xf32>
    %33 = arith.mulf %31, %32 : vector<8x32xf32>
    %34 = vector.broadcast %13 : vector<1x32xf32> to vector<8x32xf32>
    %35 = arith.addf %33, %34 : vector<8x32xf32>
    %36 = arith.truncf %35 : vector<8x32xf32> to vector<8x32xbf16>
    %c0_19 = arith.constant 0 : index
    %c0_20 = arith.constant 0 : index
    %c0_21 = arith.constant 0 : index
    %37 = vector.load %arg8[%c0_19, %c0_20, %c0_21] : memref<1x8x32xbf16, #tpu.memory_space<vmem>>, vector<1x8x32xbf16>
    %38 = vector.shape_cast %37 : vector<1x8x32xbf16> to vector<8x32xbf16>
    %39 = vector.shape_cast %36 : vector<8x32xbf16> to vector<1x8x32xbf16>
    tpu.vector_store %arg8[%c0_19, %c0_20, %c0_21], %39 {strides = array<i32>} : memref<1x8x32xbf16, #tpu.memory_space<vmem>>, vector<1x8x32xbf16>,
    return
  }
  func.func @transform_0(%arg0: i32, %arg1: i32) -> (i32, i32, i32) {
    %c0_i32 = arith.constant 0 : i32
    %c0_i32_0 = arith.constant 0 : i32
    return %arg0, %arg1, %c0_i32 : i32, i32, i32
  }
  func.func @transform_1(%arg0: i32, %arg1: i32) -> (i32, i32, i32) {
    %c0_i32 = arith.constant 0 : i32
    %c0_i32_0 = arith.constant 0 : i32
    %c0_i32_1 = arith.constant 0 : i32
    return %c0_i32, %arg1, %c0_i32_0 : i32, i32, i32
  }
  func.func @transform_2(%arg0: i32, %arg1: i32) -> (i32, i32, i32) {
    %c0_i32 = arith.constant 0 : i32
    %c0_i32_0 = arith.constant 0 : i32
    return %arg0, %arg1, %c0_i32 : i32, i32, i32
  }
  func.func @transform_3(%arg0: i32, %arg1: i32) -> (i32, i32) {
    %c0_i32 = arith.constant 0 : i32
    %c0_i32_0 = arith.constant 0 : i32
    %c0_i32_1 = arith.constant 0 : i32
    return %c0_i32, %c0_i32_0 : i32, i32
  }
  func.func @transform_4(%arg0: i32, %arg1: i32) -> (i32, i32) {
    %c0_i32 = arith.constant 0 : i32
    %c0_i32_0 = arith.constant 0 : i32
    %c0_i32_1 = arith.constant 0 : i32
    return %c0_i32, %c0_i32_0 : i32, i32
  }
  func.func @transform_5(%arg0: i32, %arg1: i32) -> (i32, i32) {
    %c0_i32 = arith.constant 0 : i32
    %c0_i32_0 = arith.constant 0 : i32
    %c0_i32_1 = arith.constant 0 : i32
    return %c0_i32, %c0_i32_0 : i32, i32
  }
  func.func @transform_6(%arg0: i32, %arg1: i32) -> (i32, i32, i32) {
    %c0_i32 = arith.constant 0 : i32
    %c0_i32_0 = arith.constant 0 : i32
    return %arg0, %arg1, %c0_i32 : i32, i32, i32
  }
}

</mosaic_0001>

<llo_original>
// kernel: tpu_custom_call.1
$region0: #{tpu_custom_call.1}
  #allocation0 [shape = 'u32[]', space=smem, size = 0x4, offset = 0x4, fixed_abs, tag = 'smem constant byte address 0x4 - core index']
  #allocation1 [shape = 'u32[144,128]{1,0:T(1,128)}', space=vmem, size = 0x12000, scoped, tag = 'internal scratch']
  %s0 = inlined_call_operand.vmem [shape: bf16[2,8,32], index: 0, kind: input, shape index: {}]
  %s1 = inlined_call_operand.vmem [shape: bf16[1,8,32], index: 1, kind: input, shape index: {}]
  %s2 = inlined_call_operand.vmem [shape: bf16[2,8,2], index: 2, kind: input, shape index: {}]
  %s3 = inlined_call_operand.vmem [shape: bf16[2,32], index: 3, kind: input, shape index: {}]
  %s4 = inlined_call_operand.vmem [shape: f32[1,32], index: 4, kind: input, shape index: {}]
  %s5 = inlined_call_operand.vmem [shape: f32[1,32], index: 5, kind: input, shape index: {}]
  %s6 = inlined_call_operand.hbm [shape: bf16[2,8,32], index: 6, kind: output, shape index: {}]
  %s7 = sld [smem:[#allocation0]]
  $region57: #{tpu_custom_call.1} parent=0
    _
  %s9 = ssub.s32 1, %s7
  %s10 = scalar_select 0, %s9, %s7
  $region1: #{tpu_custom_call.1} parent=0
    #allocation2 [shape = 'u8[4096]{0}', space=vmem, size = 0x1000, scoped, tag = 'output window, operand 0']
    #allocation3 [shape = 's32[2]{0}', space=sflag, size = 0x8, scoped, tag = 'scoped memory for tpu_custom_call.1']
    %11 = vsyncpa [#allocation3], 0
    %s12 = scalar_lea.sflag [#allocation3], 1
    %13 = vsyncpa %s12, 0
    loop: start=0, step=1, limit=4
    $region2: #{tpu_custom_call.1} parent=1 // loop_pre_header
      _
    $region3: #{tpu_custom_call.1} parent=1 // loop_header
      %s15 = sphi 0, %s19
      %p16 = scmp.ge.s32.totalorder %s15, 4
      %s22 = sphi 0, %s34
      %s23 = sphi 0, %s30
      %s24 = sphi 0, %s22
      %s25 = sphi 0, %s23
      %s26 = sphi 0, %s24
      %s27 = sphi 0, %s25
      %s39 = sphi 0, %s41
      %s42 = sphi 0, %s39
      %s43 = sphi 0, %s42
      %s59 = sphi 0, %s43
      %s65 = sphi 0, %s67
      %s68 = sphi 0, %s65
      %s69 = sphi 0, %s68
      %s85 = sphi 0, %s69
      %s93 = sphi 0, %s95
      %s96 = sphi 0, %s93
      %s97 = sphi 0, %s96
      %s113 = sphi 0, %s97
      %s117 = sphi 0, %s117
      %s119 = sphi 0, %s117
      %s120 = sphi 0, %s119
      %s134 = sphi 0, %s120
      %s138 = sphi 0, %s138
      %s140 = sphi 0, %s138
      %s141 = sphi 0, %s140
      %s155 = sphi 0, %s141
      %s159 = sphi 0, %s159
      %s161 = sphi 0, %s159
      %s162 = sphi 0, %s161
      %s176 = sphi 0, %s162
      %s184 = sphi 0, %s186
      %s187 = sphi 0, %s184
      %s188 = sphi 0, %s187
      %s204 = sphi 0, %s188
    $region4: #{tpu_custom_call.1} parent=1 // loop_header_branch
      %18 = sbr.rel (%p16) target = $region8
    $region5: #{tpu_custom_call.1} parent=1 // loop_body
      %s20 = ssub.s32 %s15, 1
      %s21 = ssub.s32 %s15, 2
      %s28 = sadd.s32 1, %s23
      %p29 = scmp.ge.s32.totalorder %s28, 1
      %s30 = scalar_select %p29, 0, %s28
      %s31 = sadd.s32 1, %s22
      %s32 = scalar_select %p29, %s31, %s22
      %p33 = scmp.ge.s32.totalorder %s32, 2
      %s34 = scalar_select %p33, 0, %s32
      %s35 = ssub.s32 %s22, %s34
      %s36 = ssub.s32 %s23, %s30
      %s37 = sor.u32 %s35, %s36
      %p38 = scmp.eq.s32.totalorder %s37, 0
      %s40 = sadd.s32 %s39, 1
      %s41 = scalar_select %p38, %s39, %s40
      %p44 = pneg %p38
      %p45 = scmp.eq.s32.totalorder %s15, 1
      %p46 = por %p44, %p45
      %p47 = scmp.ne.s32.totalorder %s39, %s42
      %p48 = scmp.eq.s32.totalorder %s15, 0
      %p49 = por %p47, %p48
      %p50 = scmp.ne.s32.totalorder %s39, %s42
      %p51 = scmp.eq.s32.totalorder %s20, 1
      %p52 = por %p50, %p51
      %p53 = scmp.ne.s32.totalorder %s42, %s43
      %p54 = scmp.eq.s32.totalorder %s20, 0
      %p55 = por %p53, %p54
      %p56 = scmp.ne.s32.totalorder %s42, %s43
      %p57 = scmp.eq.s32.totalorder %s21, 1
      %p58 = por %p56, %p57
      %p60 = scmp.ne.s32.totalorder %s43, %s59
      %p61 = scmp.eq.s32.totalorder %s21, 0
      %p62 = por %p60, %p61
      %s63 = ssub.s32 %s23, %s30
      %p64 = scmp.eq.s32.totalorder %s63, 0
      %s66 = sadd.s32 %s65, 1
      %s67 = scalar_select %p64, %s65, %s66
      %p70 = pneg %p64
      %p71 = scmp.eq.s32.totalorder %s15, 1
      %p72 = por %p70, %p71
      %p73 = scmp.ne.s32.totalorder %s65, %s68
      %p74 = scmp.eq.s32.totalorder %s15, 0
      %p75 = por %p73, %p74
      %p76 = scmp.ne.s32.totalorder %s65, %s68
      %p77 = scmp.eq.s32.totalorder %s20, 1
      %p78 = por %p76, %p77
      %p79 = scmp.ne.s32.totalorder %s68, %s69
      %p80 = scmp.eq.s32.totalorder %s20, 0
      %p81 = por %p79, %p80
      %p82 = scmp.ne.s32.totalorder %s68, %s69
      %p83 = scmp.eq.s32.totalorder %s21, 1
      %p84 = por %p82, %p83
      %p86 = scmp.ne.s32.totalorder %s69, %s85
      %p87 = scmp.eq.s32.totalorder %s21, 0
      %p88 = por %p86, %p87
      %s89 = ssub.s32 %s22, %s34
      %s90 = ssub.s32 %s23, %s30
      %s91 = sor.u32 %s89, %s90
      %p92 = scmp.eq.s32.totalorder %s91, 0
      %s94 = sadd.s32 %s93, 1
      %s95 = scalar_select %p92, %s93, %s94
      %p98 = pneg %p92
      %p99 = scmp.eq.s32.totalorder %s15, 1
      %p100 = por %p98, %p99
      %p101 = scmp.ne.s32.totalorder %s93, %s96
      %p102 = scmp.eq.s32.totalorder %s15, 0
      %p103 = por %p101, %p102
      %p104 = scmp.ne.s32.totalorder %s93, %s96
      %p105 = scmp.eq.s32.totalorder %s20, 1
      %p106 = por %p104, %p105
      %p107 = scmp.ne.s32.totalorder %s96, %s97
      %p108 = scmp.eq.s32.totalorder %s20, 0
      %p109 = por %p107, %p108
      %p110 = scmp.ne.s32.totalorder %s96, %s97
      %p111 = scmp.eq.s32.totalorder %s21, 1
      %p112 = por %p110, %p111
      %p114 = scmp.ne.s32.totalorder %s97, %s113
      %p115 = scmp.eq.s32.totalorder %s21, 0
      %p116 = por %p114, %p115
      %s118 = sadd.s32 %s117, 1
      %p121 = scmp.eq.s32.totalorder %s15, 1
      %p122 = scmp.ne.s32.totalorder %s117, %s119
      %p123 = scmp.eq.s32.totalorder %s15, 0
      %p124 = por %p122, %p123
      %p125 = scmp.ne.s32.totalorder %s117, %s119
      %p126 = scmp.eq.s32.totalorder %s20, 1
      %p127 = por %p125, %p126
      %p128 = scmp.ne.s32.totalorder %s119, %s120
      %p129 = scmp.eq.s32.totalorder %s20, 0
      %p130 = por %p128, %p129
      %p131 = scmp.ne.s32.totalorder %s119, %s120
      %p132 = scmp.eq.s32.totalorder %s21, 1
      %p133 = por %p131, %p132
      %p135 = scmp.ne.s32.totalorder %s120, %s134
      %p136 = scmp.eq.s32.totalorder %s21, 0
      %p137 = por %p135, %p136
      %s139 = sadd.s32 %s138, 1
      %p142 = scmp.eq.s32.totalorder %s15, 1
      %p143 = scmp.ne.s32.totalorder %s138, %s140
      %p144 = scmp.eq.s32.totalorder %s15, 0
      %p145 = por %p143, %p144
      %p146 = scmp.ne.s32.totalorder %s138, %s140
      %p147 = scmp.eq.s32.totalorder %s20, 1
      %p148 = por %p146, %p147
      %p149 = scmp.ne.s32.totalorder %s140, %s141
      %p150 = scmp.eq.s32.totalorder %s20, 0
      %p151 = por %p149, %p150
      %p152 = scmp.ne.s32.totalorder %s140, %s141
      %p153 = scmp.eq.s32.totalorder %s21, 1
      %p154 = por %p152, %p153
      %p156 = scmp.ne.s32.totalorder %s141, %s155
      %p157 = scmp.eq.s32.totalorder %s21, 0
      %p158 = por %p156, %p157
      %s160 = sadd.s32 %s159, 1
      %p163 = scmp.eq.s32.totalorder %s15, 1
      %p164 = scmp.ne.s32.totalorder %s159, %s161
      %p165 = scmp.eq.s32.totalorder %s15, 0
      %p166 = por %p164, %p165
      %p167 = scmp.ne.s32.totalorder %s159, %s161
      %p168 = scmp.eq.s32.totalorder %s20, 1
      %p169 = por %p167, %p168
      %p170 = scmp.ne.s32.totalorder %s161, %s162
      %p171 = scmp.eq.s32.totalorder %s20, 0
      %p172 = por %p170, %p171
      %p173 = scmp.ne.s32.totalorder %s161, %s162
      %p174 = scmp.eq.s32.totalorder %s21, 1
      %p175 = por %p173, %p174
      %p177 = scmp.ne.s32.totalorder %s162, %s176
      %p178 = scmp.eq.s32.totalorder %s21, 0
      %p179 = por %p177, %p178
      %s180 = ssub.s32 %s22, %s34
      %s181 = ssub.s32 %s23, %s30
      %s182 = sor.u32 %s180, %s181
      %p183 = scmp.eq.s32.totalorder %s182, 0
      %s185 = sadd.s32 %s184, 1
      %s186 = scalar_select %p183, %s184, %s185
      %p189 = pneg %p183
      %p190 = scmp.eq.s32.totalorder %s15, 1
      %p191 = por %p189, %p190
      %p192 = scmp.ne.s32.totalorder %s184, %s187
      %p193 = scmp.eq.s32.totalorder %s15, 0
      %p194 = por %p192, %p193
      %p195 = scmp.ne.s32.totalorder %s184, %s187
      %p196 = scmp.eq.s32.totalorder %s20, 1
      %p197 = por %p195, %p196
      %p198 = scmp.ne.s32.totalorder %s187, %s188
      %p199 = scmp.eq.s32.totalorder %s20, 0
      %p200 = por %p198, %p199
      %p201 = scmp.ne.s32.totalorder %s187, %s188
      %p202 = scmp.eq.s32.totalorder %s21, 1
      %p203 = por %p201, %p202
      %p205 = scmp.ne.s32.totalorder %s188, %s204
      %p206 = scmp.eq.s32.totalorder %s21, 0
      %p207 = por %p205, %p206
      %p208 = scmp.le.s32.totalorder 1, %s15
      %p209 = scmp.lt.s32.totalorder %s15, 3
      %p210 = pnand %p208, %p209
      %p211 = pneg %p210
      // Predicated region
      $region9: #{tpu_custom_call.1} parent=5 // pred_check
        _
      $region10: #{tpu_custom_call.1} parent=5 // pred_check_branch
        %213 = sbr.rel (%p210) target = $region12
      $region11: #{tpu_custom_call.1} parent=5 // pred_region
        %s214 = ssub.s32 %s15, 1
        // Predicated region
        $region13: #{tpu_custom_call.1} parent=11 // pred_check
          %p215 = pneg %p81
        $region14: #{tpu_custom_call.1} parent=11 // pred_check_branch
          %217 = sbr.rel (%p215) target = $region16
        $region15: #{tpu_custom_call.1} parent=11 // pred_region
          %p218 = scmp.lt.s32.totalorder %s25, 0
          %s219 = scalar_select %p218, %s25, 0
          %s220 = smul.addr %s219, 4
          %s221 = scalar_lea.vmem %s1, %s220
        $region16: #{tpu_custom_call.1} parent=11 // pred_fallthru
          _
        // Predicated region
        $region17: #{tpu_custom_call.1} parent=11 // pred_check
          %p222 = pneg %p130
        $region18: #{tpu_custom_call.1} parent=11 // pred_check_branch
          %224 = sbr.rel (%p222) target = $region20
        $region19: #{tpu_custom_call.1} parent=11 // pred_region
          _
        $region20: #{tpu_custom_call.1} parent=11 // pred_fallthru
          _
        // Predicated region
        $region21: #{tpu_custom_call.1} parent=11 // pred_check
          %p225 = pneg %p151
        $region22: #{tpu_custom_call.1} parent=11 // pred_check_branch
          %227 = sbr.rel (%p225) target = $region24
        $region23: #{tpu_custom_call.1} parent=11 // pred_region
          _
        $region24: #{tpu_custom_call.1} parent=11 // pred_fallthru
          _
        // Predicated region
        $region25: #{tpu_custom_call.1} parent=11 // pred_check
          %p228 = pneg %p172
        $region26: #{tpu_custom_call.1} parent=11 // pred_check_branch
          %230 = sbr.rel (%p228) target = $region28
        $region27: #{tpu_custom_call.1} parent=11 // pred_region
          _
        $region28: #{tpu_custom_call.1} parent=11 // pred_fallthru
          _
      $region12: #{tpu_custom_call.1} parent=5 // pred_fallthru
        _
      %p231 = scmp.lt.s32.totalorder %s15, 2
      // Predicated region
      $region29: #{tpu_custom_call.1} parent=5 // pred_check
        %p232 = pneg %p231
      $region30: #{tpu_custom_call.1} parent=5 // pred_check_branch
        %234 = sbr.rel (%p232) target = $region32
      $region31: #{tpu_custom_call.1} parent=5 // pred_region
        // Predicated region
        $region33: #{tpu_custom_call.1} parent=31 // pred_check
          %p235 = pneg %p49
        $region34: #{tpu_custom_call.1} parent=31 // pred_check_branch
          %237 = sbr.rel (%p235) target = $region36
        $region35: #{tpu_custom_call.1} parent=31 // pred_region
          %p238 = scmp.lt.s32.totalorder %s22, 1
          %s239 = scalar_select %p238, %s22, 1
          %p240 = scmp.lt.s32.totalorder %s23, 0
          %s241 = scalar_select %p240, %s23, 0
          %s242 = sadd.s32 %s241, %s239
          %s243 = smul.addr %s242, 4
          %s244 = scalar_lea.vmem %s0, %s243
        $region36: #{tpu_custom_call.1} parent=31 // pred_fallthru
          _
        // Predicated region
        $region37: #{tpu_custom_call.1} parent=31 // pred_check
          %p245 = pneg %p103
        $region38: #{tpu_custom_call.1} parent=31 // pred_check_branch
          %247 = sbr.rel (%p245) target = $region40
        $region39: #{tpu_custom_call.1} parent=31 // pred_region
          %p248 = scmp.lt.s32.totalorder %s22, 1
          %s249 = scalar_select %p248, %s22, 1
          %p250 = scmp.lt.s32.totalorder %s23, 0
          %s251 = scalar_select %p250, %s23, 0
          %s252 = sadd.s32 %s251, %s249
          %s253 = smul.addr %s252, 4
          %s254 = scalar_lea.vmem %s2, %s253
        $region40: #{tpu_custom_call.1} parent=31 // pred_fallthru
          _
      $region32: #{tpu_custom_call.1} parent=5 // pred_fallthru
        _
      %p255 = scmp.le.s32.totalorder 1, %s15
      %p256 = scmp.lt.s32.totalorder %s15, 3
      %p257 = pnand %p255, %p256
      %p258 = pneg %p257
      // Predicated region
      $region41: #{tpu_custom_call.1} parent=5 // pred_check
        _
      $region42: #{tpu_custom_call.1} parent=5 // pred_check_branch
        %260 = sbr.rel (%p257) target = $region44
      $region43: #{tpu_custom_call.1} parent=5 // pred_region
        %s261 = ssub.s32 %s15, 1
        %p262 = scmp.lt.s32.totalorder %s24, 1
        %s263 = scalar_select %p262, %s24, 1
        %p264 = scmp.lt.s32.totalorder %s25, 0
        %s265 = scalar_select %p264, %s25, 0
        %s266 = sadd.s32 %s265, %s263
        %s267 = smul.addr %s266, 4
        %s268 = scalar_lea.vmem %s0, %s267
        %p269 = pneg %p55
        %p270 = pneg %p52
        %p271 = scmp.lt.s32.totalorder %s25, 0
        %s272 = scalar_select %p271, %s25, 0
        %s273 = smul.addr %s272, 4
        %s274 = scalar_lea.vmem %s1, %s273
        %p275 = pneg %p81
        %p276 = pneg %p78
        %p277 = scmp.lt.s32.totalorder %s24, 1
        %s278 = scalar_select %p277, %s24, 1
        %p279 = scmp.lt.s32.totalorder %s25, 0
        %s280 = scalar_select %p279, %s25, 0
        %s281 = sadd.s32 %s280, %s278
        %s282 = smul.addr %s281, 4
        %s283 = scalar_lea.vmem %s2, %s282
        %p284 = pneg %p109
        %p285 = pneg %p106
        %p286 = pneg %p130
        %p287 = pneg %p127
        %p288 = pneg %p151
        %p289 = pneg %p148
        %p290 = pneg %p172
        %p291 = pneg %p169
        %p292 = pneg %p200
        %p293 = pneg %p197
        %s294 = sand.u32 %s187, 1
        %s295 = scalar_lea.sflag [#allocation3], %s294
        %s296 = sand.u32 %s187, 1
        %s297 = smul.addr %s296, 4
        %s298 = scalar_lea.vmem [#allocation2], %s297
        %p299 = scmp.lt.s32.totalorder %s24, 1
        %s300 = scalar_select %p299, %s24, 1
        %p301 = scmp.lt.s32.totalorder %s25, 0
        %s302 = scalar_select %p301, %s25, 0
        %s303 = sadd.s32 %s302, %s300
        %s304 = smul.addr %s303, 4
        %s305 = scalar_lea.vmem %s0, %s304
        %p306 = scmp.lt.s32.totalorder %s25, 0
        %s307 = scalar_select %p306, %s25, 0
        %s308 = smul.addr %s307, 4
        %s309 = scalar_lea.vmem %s1, %s308
        %p310 = scmp.lt.s32.totalorder %s24, 1
        %s311 = scalar_select %p310, %s24, 1
        %p312 = scmp.lt.s32.totalorder %s25, 0
        %s313 = scalar_select %p312, %s25, 0
        %s314 = sadd.s32 %s313, %s311
        %s315 = smul.addr %s314, 4
        %s316 = scalar_lea.vmem %s2, %s315
        %v318 = vld [vmem:[%s316] sm:$0xf]
        %v319 = vld [vmem:[%s3] sm:$0x1]
        %vm320 = vcmask 15360
        %v322 = vsel %vm320, %v318, 0
        %vm324 = vcmask 1040384
        %v326 = vsel %vm324, %v319, 0
        %328 = vmatprep.subr.bf16.mxu0 0
        %329 = vmatpush1.bf16.msra.mxu0 %v326
        %330 = vmatprep.subr.bf16.mxu0 0
        %331 = vmatpush1.bf16.msra.mxu0 0
        %332 = vmatprep.subr.bf16.mxu0 0
        %333 = vmatpush1.bf16.msra.mxu0 0
        %334 = vmatprep.subr.bf16.mxu0 0
        %335 = vmatpush1.bf16.msra.mxu0 0
        %336 = vmatprep.subr.bf16.mxu0 0
        %337 = vmatpush1.bf16.msra.mxu0 0
        %338 = vmatprep.subr.bf16.mxu0 0
        %339 = vmatpush1.bf16.msra.mxu0 0
        %340 = vmatprep.subr.bf16.mxu0 0
        %341 = vmatpush1.bf16.msra.mxu0 0
        %342 = vmatprep.subr.bf16.mxu0 0
        %343 = vmatpush1.bf16.msra.mxu0 0
        %344 = vmatprep.subr.bf16.mxu0 0
        %345 = vmatpush1.bf16.msra.mxu0 0
        %346 = vmatprep.subr.bf16.mxu0 0
        %347 = vmatpush1.bf16.msra.mxu0 0
        %348 = vmatprep.subr.bf16.mxu0 0
        %349 = vmatpush1.bf16.msra.mxu0 0
        %350 = vmatprep.subr.bf16.mxu0 0
        %351 = vmatpush1.bf16.msra.mxu0 0
        %352 = vmatprep.subr.bf16.mxu0 0
        %353 = vmatpush1.bf16.msra.mxu0 0
        %354 = vmatprep.subr.bf16.mxu0 0
        %355 = vmatpush1.bf16.msra.mxu0 0
        %356 = vmatprep.subr.bf16.mxu0 0
        %357 = vmatpush1.bf16.msra.mxu0 0
        %358 = vmatprep.subr.bf16.mxu0 0
        %359 = vmatpush1.bf16.msra.mxu0 0
        %360 = vmatprep.mubr.bf16.mxu0 0
        %361 = vmatmul.mubr.bf16.gmra.mrb[0].mxu0 %v322
        %v362 = vpop.f32.mrb[0].mxu0
        %v363 = vadd.f32 0.0, %v362
        %v364 = vpop.f32.mrb[0].mxu0
        %v365 = vpop.f32.mrb[0].mxu0
        %v366 = vpop.f32.mrb[0].mxu0
        %367 = vdwg.mxu0
        %v368 = vld [vmem:[%s305] sm:$0xf]
        %v369 = vunpack.c.l.bf16 %v368
        %v370 = vld [vmem:[%s309] sm:$0xf]
        %v371 = vunpack.c.l.bf16 %v370
        %v372 = vadd.f32 %v369, %v371
        %v373 = vadd.f32 %v372, %v363
        %v374 = vld [vmem:[%s4] sm:$0x1]
        %v375 = vld [vmem:[%s5] sm:$0x1]
        %vm376 = vcmask 261120
        %v377 = vsel %vm376, %v373, 0.0
        %378 = vadd.xlane.f32.xlu0 %v377
        %v379 = vpop.xlane.xlu0 %378
        %v380 = vrcp.pop 32.0
        %v381 = vmul.f32 %v379, %v380
        %v382 = vsub.f32 %v373, %v381
        %v383 = vmul.f32 %v382, %v382
        %v384 = vsel %vm376, %v383, 0.0
        %385 = vadd.xlane.f32.xlu0 %v384
        %v386 = vpop.xlane.xlu0 %385
        %v387 = vmul.f32 %v386, %v380
        %v388 = vadd.f32 %v387, 1e-12
        %v389 = vrsqrt.pop %v388
        %v390 = vmul.f32 %v382, %v389
        %v392 = vlaneseq
        %v393 = vshrl.u32 %v392, 7
        %v394 = vsub.s32 0, %v393
        %v395 = vrot.slane %v374, %v394
        %v397 = vmul.f32 %v390, %v395
        %v399 = vlaneseq
        %v400 = vshrl.u32 %v399, 7
        %v401 = vsub.s32 0, %v400
        %v402 = vrot.slane %v375, %v401
        %v404 = vadd.f32 %v397, %v402
        %v405 = vpack.c.bf16 %v404, %v404
        %vm406 = vcmask 257024
        %407 = vst.msk [vmem:[%s298] sm:$0xf] %vm406, %v405
        %s408 = sand.u32 %s187, 1
        %s409 = scalar_lea.sflag [#allocation3], %s408
        %s410 = sand.u32 %s187, 1
        %s411 = smul.addr %s410, 4
        %s412 = scalar_lea.vmem [#allocation2], %s411
        // Predicated region
        $region45: #{tpu_custom_call.1} parent=43 // pred_check
          %p413 = pneg %p197
        $region46: #{tpu_custom_call.1} parent=43 // pred_check_branch
          %415 = sbr.rel (%p413) target = $region48
        $region47: #{tpu_custom_call.1} parent=43 // pred_region
          %s417 = ssub.s32 64, 64
          %418 = vsyncadd %s409, %s417
          %s419 = sadd.s32 %s25, %s24
          %s420 = smul.addr %s419, 64
          %s421 = scalar_lea.hbm %s6, %s420
          %s423 = sshll.u32 %s412, 4
          %s424 = int_to_ptr.vmem [resolvable:$true] %s423
          %426 = dma.vmem_to_hbm [thread:$0]  %s424, 64, %s421, %s409
        $region48: #{tpu_custom_call.1} parent=43 // pred_fallthru
          _
      $region44: #{tpu_custom_call.1} parent=5 // pred_fallthru
        _
      %p427 = scmp.le.s32.totalorder 2, %s15
      // Predicated region
      $region49: #{tpu_custom_call.1} parent=5 // pred_check
        %p428 = pneg %p427
      $region50: #{tpu_custom_call.1} parent=5 // pred_check_branch
        %430 = sbr.rel (%p428) target = $region52
      $region51: #{tpu_custom_call.1} parent=5 // pred_region
        %s431 = ssub.s32 %s15, 2
        // Predicated region
        $region53: #{tpu_custom_call.1} parent=51 // pred_check
          %p432 = pneg %p203
        $region54: #{tpu_custom_call.1} parent=51 // pred_check_branch
          %434 = sbr.rel (%p432) target = $region56
        $region55: #{tpu_custom_call.1} parent=51 // pred_region
          %s435 = sand.u32 %s188, 1
          %s436 = scalar_lea.sflag [#allocation3], %s435
          %s437 = sand.u32 %s188, 1
          %s438 = smul.addr %s437, 4
          %s439 = scalar_lea.vmem [#allocation2], %s438
          %440 = dma.done %s436, 64
        $region56: #{tpu_custom_call.1} parent=51 // pred_fallthru
          _
      $region52: #{tpu_custom_call.1} parent=5 // pred_fallthru
        _
    $region6: #{tpu_custom_call.1} parent=1 // loop_footer
      %s19 = sadd.s32 1, %s15
    $region7: #{tpu_custom_call.1} parent=1 // loop_footer_branch
      %14 = sbr.rel target = $region3
    $region8: #{tpu_custom_call.1} parent=1 // loop_exit
      _
    %441 = vsyncpa [#allocation3], 1
    %s442 = scalar_lea.sflag [#allocation3], 1
    %443 = vsyncpa %s442, 1

</llo_original>
